<compile_context>
chip_gen: v7x
topology: tpu7x:2x2x1
jax: 0.10.0
libtpu: 0.0.40
codegen_flags: <defaults>
</compile_context>

<pallas_src>
import jax
import jax.numpy as jnp
import numpy as np
from jax.experimental import pallas as pl
from jax.experimental.pallas import tpu as pltpu


def _pick_tile(dim, max_tile, align):
    """Largest multiple of `align` that divides `dim` and is <= max_tile.

    Falls back to the full dimension (always legal as a block size)."""
    if dim <= max_tile:
        return dim
    t = (max_tile // align) * align
    while t >= align:
        if dim % t == 0:
            return t
        t -= align
    return dim


# -----------------------------------------------------------------------------
# Kernel 1: streamed layerwise-attention mix + mask_fill + average pooling
# -----------------------------------------------------------------------------
def _pool_kernel(w_ref, notpad_ref, inv_len_ref, layers_ref, out_ref, acc_ref):
    # w_ref:       SMEM [L]          gamma * softmax(scalar_params)  (f32)
    # notpad_ref:  VMEM [B, TS]      bf16 float(ids != pad_token_id)
    # inv_len_ref: VMEM [B, 1]       f32  1 / sum(attention_mask)
    # layers_ref:  VMEM [B, TS, Ht]  bf16 one (layer, seq-tile, H-tile) block
    # out_ref:     VMEM [B, Ht]      f32 sentence embedding tile
    # acc_ref:     VMEM [B, Ht]      f32 accumulator scratch
    l = pl.program_id(2)
    s = pl.program_id(3)
    n_l = pl.num_programs(2)
    n_s = pl.num_programs(3)

    @pl.when(jnp.logical_and(l == 0, s == 0))
    def _():
        acc_ref[...] = jnp.zeros_like(acc_ref)

    # fused mask_fill(0.0) + seq-sum + layer-weighted accumulation (f32 accum)
    layer = layers_ref[...].astype(jnp.float32)                   # [B, TS, Ht]
    notpad = notpad_ref[...].astype(jnp.float32)                  # [B, TS]
    masked = layer * notpad[:, :, None]                           # pad -> 0
    acc_ref[...] += w_ref[l] * jnp.sum(masked, axis=1)            # [B, Ht]

    @pl.when(jnp.logical_and(l == n_l - 1, s == n_s - 1))
    def _():
        # average_pooling normalization (sum_mask precomputed in the wrapper).
        out_ref[...] = acc_ref[...] * inv_len_ref[...]


def pooled_embeddings_pallas(all_layers, notpad, inv_len, layer_weights,
                             *, h_tile=512, block_budget_bytes=4 << 20):
    """all_layers [3,L,B,S,H] (bf16) -> sentence embeddings [3,B,H] (f32)."""
    P, L, B, S, H = all_layers.shape
    itemsize = jnp.dtype(all_layers.dtype).itemsize

    # H-tile: lane-aligned; also gives v7x megacore 3*H_tiles parallel items.
    ht = _pick_tile(H, min(h_tile, H), 128)
    # seq tile: multiple of 128 (lane dim of the notpad block) or full S,
    # sized so a single streaming buffer stays within block_budget_bytes.
    max_ts = max(128, block_budget_bytes // max(B * ht * itemsize, 1))
    ts = _pick_tile(S, max_ts, 128)

    grid = (P, H // ht, L, S // ts)

    # Explicit VMEM budget: double-buffered streaming blocks + acc scratch.
    blk = (2 * B * ts * ht * itemsize                      # all_layers blocks
           + 2 * B * ts * jnp.dtype(notpad.dtype).itemsize  # notpad blocks
           + 2 * B * 4                                      # inv_len blocks
           + 2 * B * ht * 4                                 # out blocks
           + B * ht * 4)                                    # acc scratch
    vmem_limit = int(min(max(3 * blk, 32 * 1024 * 1024), 64 * 1024 * 1024))

    return pl.pallas_call(
        _pool_kernel,
        out_shape=jax.ShapeDtypeStruct((P, B, H), jnp.float32),
        grid_spec=pltpu.PrefetchScalarGridSpec(
            num_scalar_prefetch=0,
            grid=grid,
            in_specs=[
                pl.BlockSpec(memory_space=pltpu.MemorySpace.SMEM),   # weights [L]
                pl.BlockSpec((None, B, ts), lambda p, h, l, s: (p, 0, s)),
                pl.BlockSpec((None, B, 1), lambda p, h, l, s: (p, 0, 0)),
                pl.BlockSpec((None, None, B, ts, ht),
                             lambda p, h, l, s: (p, l, 0, s, h)),
            ],
            out_specs=pl.BlockSpec((None, B, ht), lambda p, h, l, s: (p, 0, h)),
            scratch_shapes=[pltpu.VMEM((B, ht), jnp.float32)],
        ),
        compiler_params=pltpu.CompilerParams(
            dimension_semantics=("parallel", "parallel",
                                 "arbitrary", "arbitrary"),
            vmem_limit_bytes=vmem_limit),
    )(layer_weights, notpad, inv_len, all_layers)


# -----------------------------------------------------------------------------
# Kernel 2: fused estimator FC1 + FC2 + FC3, tiled only over N2.
#   at j==0:  feats = cat(mt, ref, mt*ref, |mt-ref|, mt*src, |mt-src|)  (bf16)
#             h1    = tanh(feats @ W1 + b1)        (single K=6H MXU matmul)
#   per tile: h2    = tanh(h1 @ W2[:, tile] + b2[tile])
#             score += sum_lane(h2 * w3[tile])     (no N=1 MXU matmul)
#   at last:  out   = score + b3   (lane-padded to 128; wrapper slices col 0)
# -----------------------------------------------------------------------------
def _estimator_kernel(src_ref, mt_ref, ref_ref, w1_ref, b1_ref,
                      w2_ref, b2_ref, w3t_ref, b3_ref,
                      out_ref, feats_ref, h1_ref, acc_ref):
    j = pl.program_id(0)
    h = src_ref.shape[1]

    @pl.when(j == 0)
    def _():
        src = src_ref[...]
        mt = mt_ref[...]
        ref = ref_ref[...]
        # order matches torch.cat((mt, ref, mt*ref, |mt-ref|, mt*src, |mt-src|))
        feats_ref[:, 0 * h:1 * h] = mt.astype(jnp.bfloat16)
        feats_ref[:, 1 * h:2 * h] = ref.astype(jnp.bfloat16)
        feats_ref[:, 2 * h:3 * h] = (mt * ref).astype(jnp.bfloat16)
        feats_ref[:, 3 * h:4 * h] = jnp.abs(mt - ref).astype(jnp.bfloat16)
        feats_ref[:, 4 * h:5 * h] = (mt * src).astype(jnp.bfloat16)
        feats_ref[:, 5 * h:6 * h] = jnp.abs(mt - src).astype(jnp.bfloat16)
        h1 = jnp.tanh(jnp.dot(feats_ref[...], w1_ref[...],
                              preferred_element_type=jnp.float32)
                      + b1_ref[...])
        h1_ref[...] = h1.astype(jnp.bfloat16)
        acc_ref[...] = jnp.zeros_like(acc_ref)

    h2 = jnp.tanh(jnp.dot(h1_ref[...], w2_ref[...],
                          preferred_element_type=jnp.float32) + b2_ref[...])
    acc_ref[...] += jnp.sum(h2 * w3t_ref[...], axis=1, keepdims=True)   # [B,1]

    @pl.when(j == pl.num_programs(0) - 1)
    def _():
        # lane-dense output (padded to 128 lanes; wrapper slices column 0)
        out_ref[...] = jnp.broadcast_to(acc_ref[...] + b3_ref[0], out_ref.shape)


def estimate_pallas(src_sentemb, mt_sentemb, ref_sentemb, params, *, tn2=1024):
    B, H = mt_sentemb.shape
    n1 = params["w1"].shape[1]
    n2 = params["w2"].shape[1]
    assert params["w1"].shape[0] == 6 * H
    assert H % 128 == 0, "hidden size must be lane-aligned (multiple of 128)"
    tn2 = min(tn2, n2)
    assert n2 % tn2 == 0

    # bf16 matmul operands, f32 accumulation on the MXU.
    w1 = params["w1"].astype(jnp.bfloat16)                 # [6H, n1]
    w2 = params["w2"].astype(jnp.bfloat16)                 # [n1, n2]
    w3t = params["w3"].T                                   # [1, n2] f32
    b3 = params["b3"].reshape(-1)                          # [1]     f32

    vmem_est = (2 * 6 * H * n1 * 2        # W1 (resident, double-buffered)
                + 2 * n1 * tn2 * 2        # W2 tile
                + 2 * n1 * 4 + 2 * tn2 * 4 * 2   # b1, b2, w3t
                + 2 * 3 * B * H * 4       # src/mt/ref
                + 2 * B * 128 * 4         # out
                + B * 6 * H * 2 + B * n1 * 2 + B * 4)   # scratches
    vmem_limit = int(min(max(vmem_est + (8 << 20), 32 << 20), 100 << 20))

    out = pl.pallas_call(
        _estimator_kernel,
        out_shape=jax.ShapeDtypeStruct((B, 128), jnp.float32),
        grid_spec=pltpu.PrefetchScalarGridSpec(
            num_scalar_prefetch=0,
            grid=(n2 // tn2,),
            in_specs=[
                pl.BlockSpec((B, H), lambda j: (0, 0)),            # src
                pl.BlockSpec((B, H), lambda j: (0, 0)),            # mt
                pl.BlockSpec((B, H), lambda j: (0, 0)),            # ref
                pl.BlockSpec((6 * H, n1), lambda j: (0, 0)),       # W1 (resident)
                pl.BlockSpec((1, n1), lambda j: (0, 0)),           # b1
                pl.BlockSpec((n1, tn2), lambda j: (0, j)),         # W2 tile
                pl.BlockSpec((1, tn2), lambda j: (0, j)),          # b2 tile
                pl.BlockSpec((1, tn2), lambda j: (0, j)),          # w3^T tile
                pl.BlockSpec(memory_space=pltpu.MemorySpace.SMEM),  # b3
            ],
            out_specs=pl.BlockSpec((B, 128), lambda j: (0, 0)),
            scratch_shapes=[
                pltpu.VMEM((B, 6 * H), jnp.bfloat16),   # feats
                pltpu.VMEM((B, n1), jnp.bfloat16),      # h1
                pltpu.VMEM((B, 1), jnp.float32),        # score accumulator
            ],
        ),
        compiler_params=pltpu.CompilerParams(
            dimension_semantics=("arbitrary",),
            vmem_limit_bytes=vmem_limit),
    )(src_sentemb, mt_sentemb, ref_sentemb, w1, params["b1"],
      w2, params["b2"], w3t, b3)

    return out[:, 0]                                   # .view(-1)


# -----------------------------------------------------------------------------
# Glue: synthetic deterministic encoder + parameter init + full forward
# -----------------------------------------------------------------------------
def synthetic_encoder(input_ids, emb_table, layer_proj):
    # Deterministic stand-in for the pretrained transformer: per-layer tanh
    # projections of an embedding lookup.  Returns all_layers [L,B,S,H].
    emb = emb_table[input_ids]                                   # [B,S,H]
    return jnp.tanh(jnp.einsum("bsh,lhk->lbsk", emb, layer_proj,
                               precision=jax.lax.Precision.HIGHEST))


def init_params(key, *, vocab=64, hidden=128, num_layers=4,
                hidden_sizes=(3072, 1024)):
    ks = jax.random.split(key, 9)
    in_dim = hidden * 6
    return {
        "emb_table": jax.random.normal(ks[0], (vocab, hidden), jnp.float32) * 0.1,
        "layer_proj": jax.random.normal(ks[1], (num_layers, hidden, hidden),
                                        jnp.float32) * 0.2,
        # LayerwiseAttention ("mix"): scalar params + gamma
        "scalar_params": jax.random.normal(ks[2], (num_layers,), jnp.float32) * 0.1,
        "gamma": jnp.ones((1,), jnp.float32),
        # FeedForward estimator (weights stored [in, out])
        "w1": jax.random.normal(ks[3], (in_dim, hidden_sizes[0]), jnp.float32) * 0.02,
        "b1": jax.random.normal(ks[4], (1, hidden_sizes[0]), jnp.float32) * 0.02,
        "w2": jax.random.normal(ks[5], (hidden_sizes[0], hidden_sizes[1]),
                                jnp.float32) * 0.02,
        "b2": jax.random.normal(ks[6], (1, hidden_sizes[1]), jnp.float32) * 0.02,
        "w3": jax.random.normal(ks[7], (hidden_sizes[1], 1), jnp.float32) * 0.02,
        "b3": jax.random.normal(ks[8], (1, 1), jnp.float32) * 0.02,
    }


def comet_forward(params,
                  src_ids, src_mask, mt_ids, mt_mask, ref_ids, ref_mask,
                  pad_token_id=0):
    # gamma folded into the softmaxed layer weights (O(L), wrapper-side).
    layer_weights = params["gamma"][0] * jax.nn.softmax(params["scalar_params"])

    ids = jnp.stack([src_ids, mt_ids, ref_ids])                  # [3,B,S]
    masks = jnp.stack([src_mask, mt_mask, ref_mask])             # [3,B,S]

    enc = lambda i: synthetic_encoder(i, params["emb_table"], params["layer_proj"])
    # Stream the hidden states through the pool kernel in bf16 (mem-bound).
    all_layers = jnp.stack([enc(src_ids), enc(mt_ids), enc(ref_ids)]
                           ).astype(jnp.bfloat16)                # [3,L,B,S,H]

    # Precomputed pad mask (0/1, exact in bf16) and pooling normalizer.
    # NOTE: matches the torch module — zero-fill keyed on ids==pad_token_id,
    # normalizer keyed on attention_mask; fully-padded rows divide by zero.
    notpad = (ids != pad_token_id).astype(jnp.bfloat16)          # [3,B,S]
    inv_len = 1.0 / masks.astype(jnp.float32).sum(-1, keepdims=True)  # [3,B,1]

    sentembs = pooled_embeddings_pallas(all_layers, notpad, inv_len,
                                        layer_weights)           # [3,B,H]
    return estimate_pallas(sentembs[0], sentembs[1], sentembs[2], params)


# -----------------------------------------------------------------------------
# Pure-JAX reference (mirrors the kernel's bf16 streaming / bf16 matmuls)
# -----------------------------------------------------------------------------
def comet_forward_ref(params, src_ids, src_mask, mt_ids, mt_mask,
                      ref_ids, ref_mask, pad_token_id=0):
    w = params["gamma"][0] * jax.nn.softmax(params["scalar_params"])

    def embed(ids, mask):
        layers = synthetic_encoder(ids, params["emb_table"],
                                   params["layer_proj"])         # [L,B,S,H]
        layers = layers.astype(jnp.bfloat16).astype(jnp.float32)  # kernel quant
        mix = (w[:, None, None, None] * layers).sum(0)           # [B,S,H]
        mix = jnp.where((ids == pad_token_id)[:, :, None], 0.0, mix)
        sent = mix.sum(1)
        return sent / mask.astype(jnp.float32).sum(1, keepdims=True)

    src = embed(src_ids, src_mask)
    mt = embed(mt_ids, mt_mask)
    ref = embed(ref_ids, ref_mask)

    feats = jnp.concatenate((mt, ref, mt * ref, jnp.abs(mt - ref),
                             mt * src, jnp.abs(mt - src)), axis=1)

    def dot_bf16(a, w_):
        return jnp.dot(a.astype(jnp.bfloat16), w_.astype(jnp.bfloat16),
                       preferred_element_type=jnp.float32)

    h = jnp.tanh(dot_bf16(feats, params["w1"]) + params["b1"])
    h = jnp.tanh(dot_bf16(h, params["w2"]) + params["b2"])
    score = (h * params["w3"].T).sum(axis=1, keepdims=True) + params["b3"]
    return score.reshape(-1)


if __name__ == "__main__":
    B, S, H, L, V = 2, 8, 128, 4, 64
    key = jax.random.PRNGKey(0)
    k_params, k_src, k_mt, k_ref = jax.random.split(key, 4)

    params = init_params(k_params, vocab=V, hidden=H, num_layers=L)

    def make_ids(k, pad_from):
        ids = jax.random.randint(k, (B, S), 1, V, dtype=jnp.int32)
        ids = ids.at[0, pad_from:].set(0)          # pad tail of sentence 0
        ids = ids.at[1, pad_from - 1:].set(0)      # pad tail of sentence 1
        mask = (ids != 0).astype(jnp.int32)
        return ids, mask

    src_ids, src_mask = make_ids(k_src, 6)
    mt_ids, mt_mask = make_ids(k_mt, 7)
    ref_ids, ref_mask = make_ids(k_ref, 5)

    scores = comet_forward(params, src_ids, src_mask, mt_ids, mt_mask,
                           ref_ids, ref_mask)
    scores = jax.block_until_ready(scores)
    assert scores.shape == (B,)

    expected = comet_forward_ref(params, src_ids, src_mask, mt_ids, mt_mask,
                                 ref_ids, ref_mask)
    np.testing.assert_allclose(np.asarray(scores), np.asarray(expected),
                               rtol=2e-3, atol=5e-4)
    print("KERNEL_OK")
</pallas_src>

<mosaic_0001>
module attributes {stable_mosaic.version = 11 : i64} {
  func.func @_pool_kernel(%arg0: i32, %arg1: i32, %arg2: i32, %arg3: i32, %arg4: memref<4xf32, #tpu.memory_space<smem>>, %arg5: memref<1x2x8xbf16, #tpu.memory_space<vmem>>, %arg6: memref<1x2x1xf32, #tpu.memory_space<vmem>>, %arg7: memref<1x1x2x8x128xbf16, #tpu.memory_space<vmem>>, %arg8: memref<1x2x128xf32, #tpu.memory_space<vmem>>, %arg9: memref<2x128xf32, #tpu.memory_space<vmem>>) attributes {dimension_semantics = [#tpu.dimension_semantics<parallel>, #tpu.dimension_semantics<parallel>, #tpu.dimension_semantics<arbitrary>, #tpu.dimension_semantics<arbitrary>], iteration_bounds = array<i64: 3, 1, 4, 1>, scalar_prefetch = 0 : i64, scratch_operands = 1 : i64, tpu.core_type = #tpu.core_type<tc>, window_params = [{transform_indices = @transform_0, window_bounds = array<i64: 4>}, {transform_indices = @transform_1, window_bounds = array<i64: 1, 2, 8>}, {transform_indices = @transform_2, window_bounds = array<i64: 1, 2, 1>}, {transform_indices = @transform_3, window_bounds = array<i64: 1, 1, 2, 8, 128>}, {transform_indices = @transform_4, window_bounds = array<i64: 1, 2, 128>}]} {
    %c0_i32 = arith.constant 0 : i32
    %0 = arith.cmpi eq, %arg2, %c0_i32 : i32
    %c0_i32_0 = arith.constant 0 : i32
    %1 = arith.cmpi eq, %arg3, %c0_i32_0 : i32
    %2 = arith.andi %0, %1 : i1
    %3 = arith.extui %2 : i1 to i32
    %c0_i32_1 = arith.constant 0 : i32
    %4 = arith.cmpi ne, %3, %c0_i32_1 : i32
    scf.if %4 {
      %cst_15 = arith.constant 0.000000e+00 : f32
      %27 = vector.broadcast %cst_15 : f32 to vector<2x128xf32>
      %c0_16 = arith.constant 0 : index
      %c0_17 = arith.constant 0 : index
      %28 = vector.load %arg9[%c0_16, %c0_17] : memref<2x128xf32, #tpu.memory_space<vmem>>, vector<2x128xf32>
      tpu.vector_store %arg9[%c0_16, %c0_17], %27 {strides = array<i32>} : memref<2x128xf32, #tpu.memory_space<vmem>>, vector<2x128xf32>,
    } else {
    }
    %c0 = arith.constant 0 : index
    %c0_2 = arith.constant 0 : index
    %c0_3 = arith.constant 0 : index
    %c0_4 = arith.constant 0 : index
    %c0_5 = arith.constant 0 : index
    %5 = vector.load %arg7[%c0, %c0_2, %c0_3, %c0_4, %c0_5] : memref<1x1x2x8x128xbf16, #tpu.memory_space<vmem>>, vector<1x1x2x8x128xbf16>
    %6 = vector.shape_cast %5 : vector<1x1x2x8x128xbf16> to vector<2x8x128xbf16>
    %7 = arith.extf %6 : vector<2x8x128xbf16> to vector<2x8x128xf32>
    %c0_6 = arith.constant 0 : index
    %c0_7 = arith.constant 0 : index
    %c0_8 = arith.constant 0 : index
    %8 = vector.load %arg5[%c0_6, %c0_7, %c0_8] : memref<1x2x8xbf16, #tpu.memory_space<vmem>>, vector<1x2x8xbf16>
    %9 = vector.shape_cast %8 : vector<1x2x8xbf16> to vector<2x8xbf16>
    %10 = arith.extf %9 : vector<2x8xbf16> to vector<2x8xf32>
    %11 = vector.shape_cast %10 : vector<2x8xf32> to vector<2x8x1xf32>
    %12 = vector.broadcast %11 : vector<2x8x1xf32> to vector<2x8x128xf32>
    %13 = arith.mulf %7, %12 : vector<2x8x128xf32>
    %c0_9 = arith.constant 0 : index
    %c0_10 = arith.constant 0 : index
    %14 = vector.load %arg9[%c0_9, %c0_10] : memref<2x128xf32, #tpu.memory_space<vmem>>, vector<2x128xf32>
    %15 = arith.index_cast %arg2 : i32 to index
    %16 = memref.load %arg4[%15] : memref<4xf32, #tpu.memory_space<smem>>
    %cst = arith.constant dense<0.000000e+00> : vector<2x128xf32>
    %17 = vector.multi_reduction <add>, %13, %cst [1] : vector<2x8x128xf32> to vector<2x128xf32>
    %18 = vector.broadcast %16 : f32 to vector<2x128xf32>
    %19 = arith.mulf %18, %17 : vector<2x128xf32>
    %20 = arith.addf %14, %19 : vector<2x128xf32>
    %c0_11 = arith.constant 0 : index
    %c0_12 = arith.constant 0 : index
    %21 = vector.load %arg9[%c0_11, %c0_12] : memref<2x128xf32, #tpu.memory_space<vmem>>, vector<2x128xf32>
    tpu.vector_store %arg9[%c0_11, %c0_12], %20 {strides = array<i32>} : memref<2x128xf32, #tpu.memory_space<vmem>>, vector<2x128xf32>,
    %c3_i32 = arith.constant 3 : i32
    %22 = arith.cmpi eq, %arg2, %c3_i32 : i32
    %c0_i32_13 = arith.constant 0 : i32
    %23 = arith.cmpi eq, %arg3, %c0_i32_13 : i32
    %24 = arith.andi %22, %23 : i1
    %25 = arith.extui %24 : i1 to i32
    %c0_i32_14 = arith.constant 0 : i32
    %26 = arith.cmpi ne, %25, %c0_i32_14 : i32
    scf.if %26 {
      %c0_15 = arith.constant 0 : index
      %c0_16 = arith.constant 0 : index
      %27 = vector.load %arg9[%c0_15, %c0_16] : memref<2x128xf32, #tpu.memory_space<vmem>>, vector<2x128xf32>
      %c0_17 = arith.constant 0 : index
      %c0_18 = arith.constant 0 : index
      %c0_19 = arith.constant 0 : index
      %28 = vector.load %arg6[%c0_17, %c0_18, %c0_19] : memref<1x2x1xf32, #tpu.memory_space<vmem>>, vector<1x2x1xf32>
      %29 = vector.shape_cast %28 : vector<1x2x1xf32> to vector<2x1xf32>
      %30 = vector.broadcast %29 : vector<2x1xf32> to vector<2x128xf32>
      %31 = arith.mulf %27, %30 : vector<2x128xf32>
      %c0_20 = arith.constant 0 : index
      %c0_21 = arith.constant 0 : index
      %c0_22 = arith.constant 0 : index
      %32 = vector.load %arg8[%c0_20, %c0_21, %c0_22] : memref<1x2x128xf32, #tpu.memory_space<vmem>>, vector<1x2x128xf32>
      %33 = vector.shape_cast %32 : vector<1x2x128xf32> to vector<2x128xf32>
      %34 = vector.shape_cast %31 : vector<2x128xf32> to vector<1x2x128xf32>
      tpu.vector_store %arg8[%c0_20, %c0_21, %c0_22], %34 {strides = array<i32>} : memref<1x2x128xf32, #tpu.memory_space<vmem>>, vector<1x2x128xf32>,
    } else {
    }
    return
  }
  func.func @transform_0(%arg0: i32, %arg1: i32, %arg2: i32, %arg3: i32) -> i32 {
    %c0_i32 = arith.constant 0 : i32
    %c0_i32_0 = arith.constant 0 : i32
    return %c0_i32 : i32
  }
  func.func @transform_1(%arg0: i32, %arg1: i32, %arg2: i32, %arg3: i32) -> (i32, i32, i32) {
    %c0_i32 = arith.constant 0 : i32
    %c0_i32_0 = arith.constant 0 : i32
    return %arg0, %c0_i32, %arg3 : i32, i32, i32
  }
  func.func @transform_2(%arg0: i32, %arg1: i32, %arg2: i32, %arg3: i32) -> (i32, i32, i32) {
    %c0_i32 = arith.constant 0 : i32
    %c0_i32_0 = arith.constant 0 : i32
    %c0_i32_1 = arith.constant 0 : i32
    return %arg0, %c0_i32, %c0_i32_0 : i32, i32, i32
  }
  func.func @transform_3(%arg0: i32, %arg1: i32, %arg2: i32, %arg3: i32) -> (i32, i32, i32, i32, i32) {
    %c0_i32 = arith.constant 0 : i32
    %c0_i32_0 = arith.constant 0 : i32
    return %arg0, %arg2, %c0_i32, %arg3, %arg1 : i32, i32, i32, i32, i32
  }
  func.func @transform_4(%arg0: i32, %arg1: i32, %arg2: i32, %arg3: i32) -> (i32, i32, i32) {
    %c0_i32 = arith.constant 0 : i32
    %c0_i32_0 = arith.constant 0 : i32
    return %arg0, %c0_i32, %arg1 : i32, i32, i32
  }
}

</mosaic_0001>

<llo_original>
// kernel: tpu_custom_call.1
$region0: #{tpu_custom_call.1}
  #allocation0 [shape = 'u32[]', space=smem, size = 0x4, offset = 0x4, fixed_abs, tag = 'smem constant byte address 0x4 - core index']
  #allocation1 [shape = 'u32[144,128]{1,0:T(1,128)}', space=vmem, size = 0x12000, scoped, tag = 'internal scratch']
  #allocation2 [shape = 'f32[2,128]{1,0:T(2,128)}', space=vmem, size = 0x400, scoped, tag = 'scratch operand']
  %s0 = inlined_call_operand.vmem [shape: f32[4], index: 0, kind: input, shape index: {}]
  %s1 = inlined_call_operand.vmem [shape: bf16[3,2,8], index: 1, kind: input, shape index: {}]
  %s2 = inlined_call_operand.vmem [shape: f32[3,2,1], index: 2, kind: input, shape index: {}]
  %s3 = inlined_call_operand.hbm [shape: bf16[3,4,2,8,128], index: 3, kind: input, shape index: {}]
  %s4 = inlined_call_operand.hbm [shape: f32[3,2,128], index: 4, kind: output, shape index: {}]
  %s5 = sld [smem:[#allocation0]]
  $region65: #{tpu_custom_call.1} parent=0
    _
  %s7 = ssub.s32 1, %s5
  %s8 = scalar_select 0, %s7, %s5
  $region1: #{tpu_custom_call.1} parent=0
    #allocation3 [shape = 'u8[512]{0}', space=smem, size = 0x200, scoped, tag = 'input window, operand 0, single buffered']
    #allocation4 [shape = 's32[2]{0}', space=sflag, size = 0x8, scoped, tag = 'scoped memory for tpu_custom_call.1']
    #allocation5 [shape = 's32[2]{0}', space=sflag, size = 0x8, scoped, tag = 'scoped memory for tpu_custom_call.1']
    #allocation6 [shape = 's32[2]{0}', space=sflag, size = 0x8, scoped, tag = 'scoped memory for tpu_custom_call.1']
    #allocation7 [shape = 'u8[8192]{0}', space=vmem, size = 0x2000, scoped, tag = 'input window, operand 3']
    #allocation8 [shape = 'u8[2048]{0}', space=vmem, size = 0x800, scoped, tag = 'output window, operand 0']
    %9 = vsyncpa [#allocation6], 0
    %10 = vsyncpa [#allocation4], 0
    %s11 = scalar_lea.sflag [#allocation4], 1
    %12 = vsyncpa %s11, 0
    %13 = vsyncpa [#allocation5], 0
    %s14 = scalar_lea.sflag [#allocation5], 1
    %15 = vsyncpa %s14, 0
    loop: start=0, step=1, limit=14
    $region2: #{tpu_custom_call.1} parent=1 // loop_pre_header
      _
    $region3: #{tpu_custom_call.1} parent=1 // loop_header
      %s17 = sphi 0, %s21
      %p18 = scmp.ge.s32.totalorder %s17, 14
      %s24 = sphi 0, %s50
      %s25 = sphi 0, %s46
      %s26 = sphi 0, %s42
      %s27 = sphi 0, %s38
      %s28 = sphi 0, %s24
      %s29 = sphi 0, %s25
      %s30 = sphi 0, %s26
      %s31 = sphi 0, %s27
      %s32 = sphi 0, %s28
      %s33 = sphi 0, %s29
      %s34 = sphi 0, %s30
      %s35 = sphi 0, %s31
      %s51 = sphi 0, %s51
      %s53 = sphi 0, %s51
      %s54 = sphi 0, %s53
      %s68 = sphi 0, %s54
      %s76 = sphi 0, %s78
      %s79 = sphi 0, %s76
      %s80 = sphi 0, %s79
      %s96 = sphi 0, %s80
      %s102 = sphi 0, %s104
      %s105 = sphi 0, %s102
      %s106 = sphi 0, %s105
      %s122 = sphi 0, %s106
      %s134 = sphi 0, %s136
      %s137 = sphi 0, %s134
      %s138 = sphi 0, %s137
      %s154 = sphi 0, %s138
      %s162 = sphi 0, %s164
      %s165 = sphi 0, %s162
      %s166 = sphi 0, %s165
      %s182 = sphi 0, %s166
    $region4: #{tpu_custom_call.1} parent=1 // loop_header_branch
      %20 = sbr.rel (%p18) target = $region8
    $region5: #{tpu_custom_call.1} parent=1 // loop_body
      %s22 = ssub.s32 %s17, 1
      %s23 = ssub.s32 %s17, 2
      %s36 = sadd.s32 1, %s27
      %p37 = scmp.ge.s32.totalorder %s36, 1
      %s38 = scalar_select %p37, 0, %s36
      %s39 = sadd.s32 1, %s26
      %s40 = scalar_select %p37, %s39, %s26
      %p41 = scmp.ge.s32.totalorder %s40, 4
      %s42 = scalar_select %p41, 0, %s40
      %s43 = sadd.s32 1, %s25
      %s44 = scalar_select %p41, %s43, %s25
      %p45 = scmp.ge.s32.totalorder %s44, 1
      %s46 = scalar_select %p45, 0, %s44
      %s47 = sadd.s32 1, %s24
      %s48 = scalar_select %p45, %s47, %s24
      %p49 = scmp.ge.s32.totalorder %s48, 3
      %s50 = scalar_select %p49, 0, %s48
      %s52 = sadd.s32 %s51, 1
      %p55 = scmp.eq.s32.totalorder %s17, 11
      %p56 = scmp.ne.s32.totalorder %s51, %s53
      %p57 = scmp.eq.s32.totalorder %s17, 0
      %p58 = por %p56, %p57
      %p59 = scmp.ne.s32.totalorder %s51, %s53
      %p60 = scmp.eq.s32.totalorder %s22, 11
      %p61 = por %p59, %p60
      %p62 = scmp.ne.s32.totalorder %s53, %s54
      %p63 = scmp.eq.s32.totalorder %s22, 0
      %p64 = por %p62, %p63
      %p65 = scmp.ne.s32.totalorder %s53, %s54
      %p66 = scmp.eq.s32.totalorder %s23, 11
      %p67 = por %p65, %p66
      %p69 = scmp.ne.s32.totalorder %s54, %s68
      %p70 = scmp.eq.s32.totalorder %s23, 0
      %p71 = por %p69, %p70
      %s72 = ssub.s32 %s24, %s50
      %s73 = ssub.s32 %s27, %s38
      %s74 = sor.u32 %s72, %s73
      %p75 = scmp.eq.s32.totalorder %s74, 0
      %s77 = sadd.s32 %s76, 1
      %s78 = scalar_select %p75, %s76, %s77
      %p81 = pneg %p75
      %p82 = scmp.eq.s32.totalorder %s17, 11
      %p83 = por %p81, %p82
      %p84 = scmp.ne.s32.totalorder %s76, %s79
      %p85 = scmp.eq.s32.totalorder %s17, 0
      %p86 = por %p84, %p85
      %p87 = scmp.ne.s32.totalorder %s76, %s79
      %p88 = scmp.eq.s32.totalorder %s22, 11
      %p89 = por %p87, %p88
      %p90 = scmp.ne.s32.totalorder %s79, %s80
      %p91 = scmp.eq.s32.totalorder %s22, 0
      %p92 = por %p90, %p91
      %p93 = scmp.ne.s32.totalorder %s79, %s80
      %p94 = scmp.eq.s32.totalorder %s23, 11
      %p95 = por %p93, %p94
      %p97 = scmp.ne.s32.totalorder %s80, %s96
      %p98 = scmp.eq.s32.totalorder %s23, 0
      %p99 = por %p97, %p98
      %s100 = ssub.s32 %s24, %s50
      %p101 = scmp.eq.s32.totalorder %s100, 0
      %s103 = sadd.s32 %s102, 1
      %s104 = scalar_select %p101, %s102, %s103
      %p107 = pneg %p101
      %p108 = scmp.eq.s32.totalorder %s17, 11
      %p109 = por %p107, %p108
      %p110 = scmp.ne.s32.totalorder %s102, %s105
      %p111 = scmp.eq.s32.totalorder %s17, 0
      %p112 = por %p110, %p111
      %p113 = scmp.ne.s32.totalorder %s102, %s105
      %p114 = scmp.eq.s32.totalorder %s22, 11
      %p115 = por %p113, %p114
      %p116 = scmp.ne.s32.totalorder %s105, %s106
      %p117 = scmp.eq.s32.totalorder %s22, 0
      %p118 = por %p116, %p117
      %p119 = scmp.ne.s32.totalorder %s105, %s106
      %p120 = scmp.eq.s32.totalorder %s23, 11
      %p121 = por %p119, %p120
      %p123 = scmp.ne.s32.totalorder %s106, %s122
      %p124 = scmp.eq.s32.totalorder %s23, 0
      %p125 = por %p123, %p124
      %s126 = ssub.s32 %s24, %s50
      %s127 = ssub.s32 %s26, %s42
      %s128 = sor.u32 %s126, %s127
      %s129 = ssub.s32 %s27, %s38
      %s130 = sor.u32 %s128, %s129
      %s131 = ssub.s32 %s25, %s46
      %s132 = sor.u32 %s130, %s131
      %p133 = scmp.eq.s32.totalorder %s132, 0
      %s135 = sadd.s32 %s134, 1
      %s136 = scalar_select %p133, %s134, %s135
      %p139 = pneg %p133
      %p140 = scmp.eq.s32.totalorder %s17, 11
      %p141 = por %p139, %p140
      %p142 = scmp.ne.s32.totalorder %s134, %s137
      %p143 = scmp.eq.s32.totalorder %s17, 0
      %p144 = por %p142, %p143
      %p145 = scmp.ne.s32.totalorder %s134, %s137
      %p146 = scmp.eq.s32.totalorder %s22, 11
      %p147 = por %p145, %p146
      %p148 = scmp.ne.s32.totalorder %s137, %s138
      %p149 = scmp.eq.s32.totalorder %s22, 0
      %p150 = por %p148, %p149
      %p151 = scmp.ne.s32.totalorder %s137, %s138
      %p152 = scmp.eq.s32.totalorder %s23, 11
      %p153 = por %p151, %p152
      %p155 = scmp.ne.s32.totalorder %s138, %s154
      %p156 = scmp.eq.s32.totalorder %s23, 0
      %p157 = por %p155, %p156
      %s158 = ssub.s32 %s24, %s50
      %s159 = ssub.s32 %s25, %s46
      %s160 = sor.u32 %s158, %s159
      %p161 = scmp.eq.s32.totalorder %s160, 0
      %s163 = sadd.s32 %s162, 1
      %s164 = scalar_select %p161, %s162, %s163
      %p167 = pneg %p161
      %p168 = scmp.eq.s32.totalorder %s17, 11
      %p169 = por %p167, %p168
      %p170 = scmp.ne.s32.totalorder %s162, %s165
      %p171 = scmp.eq.s32.totalorder %s17, 0
      %p172 = por %p170, %p171
      %p173 = scmp.ne.s32.totalorder %s162, %s165
      %p174 = scmp.eq.s32.totalorder %s22, 11
      %p175 = por %p173, %p174
      %p176 = scmp.ne.s32.totalorder %s165, %s166
      %p177 = scmp.eq.s32.totalorder %s22, 0
      %p178 = por %p176, %p177
      %p179 = scmp.ne.s32.totalorder %s165, %s166
      %p180 = scmp.eq.s32.totalorder %s23, 11
      %p181 = por %p179, %p180
      %p183 = scmp.ne.s32.totalorder %s166, %s182
      %p184 = scmp.eq.s32.totalorder %s23, 0
      %p185 = por %p183, %p184
      %p186 = scmp.le.s32.totalorder 1, %s17
      %p187 = scmp.lt.s32.totalorder %s17, 13
      %p188 = pnand %p186, %p187
      %p189 = pneg %p188
      // Predicated region
      $region9: #{tpu_custom_call.1} parent=5 // pred_check
        _
      $region10: #{tpu_custom_call.1} parent=5 // pred_check_branch
        %191 = sbr.rel (%p188) target = $region12
      $region11: #{tpu_custom_call.1} parent=5 // pred_region
        %s192 = ssub.s32 %s17, 1
        // Predicated region
        $region13: #{tpu_custom_call.1} parent=11 // pred_check
          %p193 = pneg %p64
        $region14: #{tpu_custom_call.1} parent=11 // pred_check_branch
          %195 = sbr.rel (%p193) target = $region16
        $region15: #{tpu_custom_call.1} parent=11 // pred_region
          %s197 = ssub.s32 16, 16
          %198 = vsyncadd [#allocation6], %s197
          %s200 = sshll.u32 %s0, 4
          %s201 = int_to_ptr.vmem [resolvable:$true] %s200
          %203 = dma.vmem_to_smem %s201, 16, [#allocation3], [#allocation6]
        $region16: #{tpu_custom_call.1} parent=11 // pred_fallthru
          _
      $region12: #{tpu_custom_call.1} parent=5 // pred_fallthru
        _
      %p204 = scmp.lt.s32.totalorder %s17, 12
      // Predicated region
      $region17: #{tpu_custom_call.1} parent=5 // pred_check
        %p205 = pneg %p204
      $region18: #{tpu_custom_call.1} parent=5 // pred_check_branch
        %207 = sbr.rel (%p205) target = $region20
      $region19: #{tpu_custom_call.1} parent=5 // pred_region
        // Predicated region
        $region21: #{tpu_custom_call.1} parent=19 // pred_check
          %p208 = pneg %p86
        $region22: #{tpu_custom_call.1} parent=19 // pred_check_branch
          %210 = sbr.rel (%p208) target = $region24
        $region23: #{tpu_custom_call.1} parent=19 // pred_region
          %p211 = scmp.lt.s32.totalorder %s24, 2
          %s212 = scalar_select %p211, %s24, 2
          %p213 = scmp.lt.s32.totalorder %s27, 0
          %s214 = scalar_select %p213, %s27, 0
          %s215 = sadd.s32 %s214, %s212
          %s216 = scalar_lea.vmem %s1, %s215
        $region24: #{tpu_custom_call.1} parent=19 // pred_fallthru
          _
        // Predicated region
        $region25: #{tpu_custom_call.1} parent=19 // pred_check
          %p217 = pneg %p112
        $region26: #{tpu_custom_call.1} parent=19 // pred_check_branch
          %219 = sbr.rel (%p217) target = $region28
        $region27: #{tpu_custom_call.1} parent=19 // pred_region
          %p220 = scmp.lt.s32.totalorder %s24, 2
          %s221 = scalar_select %p220, %s24, 2
          %s222 = smul.addr %s221, 2
          %s223 = scalar_lea.vmem %s2, %s222
        $region28: #{tpu_custom_call.1} parent=19 // pred_fallthru
          _
        // Predicated region
        $region29: #{tpu_custom_call.1} parent=19 // pred_check
          %p224 = pneg %p144
        $region30: #{tpu_custom_call.1} parent=19 // pred_check_branch
          %226 = sbr.rel (%p224) target = $region32
        $region31: #{tpu_custom_call.1} parent=19 // pred_region
          %s227 = sand.u32 %s134, 1
          %s228 = scalar_lea.sflag [#allocation4], %s227
          %s229 = sand.u32 %s134, 1
          %s230 = smul.addr %s229, 8
          %s231 = scalar_lea.vmem [#allocation7], %s230
          %s233 = ssub.s32 128, 128
          %234 = vsyncadd %s228, %s233
          %s235 = sadd.s32 %s25, %s27
          %s236 = smul.addr %s26, 2
          %s237 = sadd.s32 %s235, %s236
          %s238 = smul.addr %s24, 8
          %s239 = sadd.s32 %s237, %s238
          %s240 = smul.addr %s239, 64
          %s241 = scalar_lea.hbm %s3, %s240
          %s242 = sshll.u32 %s231, 4
          %s243 = int_to_ptr.vmem [resolvable:$true] %s242
          %248 = dma.hbm_to_vmem [thread:$0]  %s241, 128, %s243, %s228, 64, 64, 4
        $region32: #{tpu_custom_call.1} parent=19 // pred_fallthru
          _
      $region20: #{tpu_custom_call.1} parent=5 // pred_fallthru
        _
      %p249 = scmp.le.s32.totalorder 1, %s17
      %p250 = scmp.lt.s32.totalorder %s17, 13
      %p251 = pnand %p249, %p250
      %p252 = pneg %p251
      // Predicated region
      $region33: #{tpu_custom_call.1} parent=5 // pred_check
        _
      $region34: #{tpu_custom_call.1} parent=5 // pred_check_branch
        %254 = sbr.rel (%p251) target = $region36
      $region35: #{tpu_custom_call.1} parent=5 // pred_region
        %s255 = ssub.s32 %s17, 1
        // Predicated region
        $region37: #{tpu_custom_call.1} parent=35 // pred_check
          %p256 = pneg %p64
        $region38: #{tpu_custom_call.1} parent=35 // pred_check_branch
          %258 = sbr.rel (%p256) target = $region40
        $region39: #{tpu_custom_call.1} parent=35 // pred_region
          %259 = dma.done [#allocation6], 16
        $region40: #{tpu_custom_call.1} parent=35 // pred_fallthru
          _
        %s260 = sand.u32 %s137, 1
        %s261 = scalar_lea.sflag [#allocation4], %s260
        %s262 = sand.u32 %s137, 1
        %s263 = smul.addr %s262, 8
        %s264 = scalar_lea.vmem [#allocation7], %s263
        // Predicated region
        $region41: #{tpu_custom_call.1} parent=35 // pred_check
          %p265 = pneg %p150
        $region42: #{tpu_custom_call.1} parent=35 // pred_check_branch
          %267 = sbr.rel (%p265) target = $region44
        $region43: #{tpu_custom_call.1} parent=35 // pred_region
          %268 = dma.done %s261, 128
        $region44: #{tpu_custom_call.1} parent=35 // pred_fallthru
          _
        %269 = sfence
        %p270 = pneg %p64
        %p271 = pneg %p61
        %p272 = scmp.lt.s32.totalorder %s28, 2
        %s273 = scalar_select %p272, %s28, 2
        %p274 = scmp.lt.s32.totalorder %s31, 0
        %s275 = scalar_select %p274, %s31, 0
        %s276 = sadd.s32 %s275, %s273
        %s277 = scalar_lea.vmem %s1, %s276
        %p278 = pneg %p92
        %p279 = pneg %p89
        %p280 = scmp.lt.s32.totalorder %s28, 2
        %s281 = scalar_select %p280, %s28, 2
        %s282 = smul.addr %s281, 2
        %s283 = scalar_lea.vmem %s2, %s282
        %p284 = pneg %p118
        %p285 = pneg %p115
        %s286 = sand.u32 %s137, 1
        %s287 = scalar_lea.sflag [#allocation4], %s286
        %s288 = sand.u32 %s137, 1
        %s289 = smul.addr %s288, 8
        %s290 = scalar_lea.vmem [#allocation7], %s289
        %p291 = pneg %p150
        %p292 = pneg %p147
        %p293 = pneg %p178
        %p294 = pneg %p175
        %s295 = sand.u32 %s165, 1
        %s296 = scalar_lea.sflag [#allocation5], %s295
        %s297 = sand.u32 %s165, 1
        %s298 = smul.addr %s297, 2
        %s299 = scalar_lea.vmem [#allocation8], %s298
        %p300 = scmp.lt.s32.totalorder %s28, 2
        %s301 = scalar_select %p300, %s28, 2
        %p302 = scmp.lt.s32.totalorder %s31, 0
        %s303 = scalar_select %p302, %s31, 0
        %s304 = sadd.s32 %s303, %s301
        %s305 = scalar_lea.vmem %s1, %s304
        %p306 = scmp.lt.s32.totalorder %s28, 2
        %s307 = scalar_select %p306, %s28, 2
        %s308 = smul.addr %s307, 2
        %s309 = scalar_lea.vmem %s2, %s308
        %p310 = scmp.eq.s32.totalorder %s30, 0
        %p311 = scmp.eq.s32.totalorder %s31, 0
        %p312 = pnand %p310, %p311
        %p313 = pneg %p312
        // Predicated region
        $region45: #{tpu_custom_call.1} parent=35 // pred_check
          _
        $region46: #{tpu_custom_call.1} parent=35 // pred_check_branch
          %315 = sbr.rel (%p312) target = $region48
        $region47: #{tpu_custom_call.1} parent=35 // pred_region
          %316 = vst [vmem:[#allocation2] sm:$0x3] 0.0
        $region48: #{tpu_custom_call.1} parent=35 // pred_fallthru
          _
        %v317 = vld [vmem:[%s264] sm:$0xf]
        %v318 = vld [vmem:[%s264 + $0x4] sm:$0xf]
        %v319 = vunpack.c.l.bf16 %v317
        %v320 = vunpack.c.l.bf16 %v318
        %v321 = vld [vmem:[%s305] sm:$0x1]
        %v322 = vunpack.c.l.bf16 %v321
        %v323 = vlaneseq
        %v324 = vshrl.u32 %v323, 7
        %v325 = vsub.s32 0, %v324
        %v326 = vrot.slane %v322, %v325
        %328 = vbcast.lane.b32.xlu0 %v326, 256
        %v329 = vpop.permute.xlu0 %328
        %v330 = vlaneseq
        %v331 = vshrl.u32 %v330, 7
        %v332 = vsub.s32 1, %v331
        %v333 = vrot.slane %v322, %v332
        %335 = vbcast.lane.b32.xlu0 %v333, 256
        %v336 = vpop.permute.xlu0 %335
        %v337 = vmul.f32 %v319, %v329
        %v338 = vmul.f32 %v320, %v336
        %v339 = vld [vmem:[#allocation2] sm:$0x3]
        %s340 = sld [smem:[#allocation3 + %s30]]
        %v341 = vrot.slane %v337, 4
        %v342 = vadd.f32 %v337, %v341
        %v343 = vrot.slane %v342, 2
        %v344 = vadd.f32 %v342, %v343
        %v345 = vrot.slane %v344, 1
        %v346 = vadd.f32 %v344, %v345
        %v347 = vrot.slane %v338, 4
        %v348 = vadd.f32 %v338, %v347
        %v349 = vrot.slane %v348, 2
        %v350 = vadd.f32 %v348, %v349
        %v351 = vrot.slane %v350, 1
        %v352 = vadd.f32 %v350, %v351
        %v353 = vstv %s340
        %v354 = vmul.f32 %v353, %v346
        %v355 = vmul.f32 %v353, %v352
        %vm358 = vcmask 1041409
        %v359 = vsel %vm358, %v355, %v354
        %v361 = vadd.f32 %v339, %v359
        %362 = vst [vmem:[#allocation2] sm:$0x3] %v361
        %p363 = scmp.eq.s32.totalorder %s30, 3
        %p364 = pnand %p363, %p311
        %p365 = pneg %p364
        // Predicated region
        $region49: #{tpu_custom_call.1} parent=35 // pred_check
          _
        $region50: #{tpu_custom_call.1} parent=35 // pred_check_branch
          %367 = sbr.rel (%p364) target = $region52
        $region51: #{tpu_custom_call.1} parent=35 // pred_region
          %v368 = vld [vmem:[#allocation2] sm:$0x3]
          %v369 = vld [vmem:[%s309] sm:$0x3]
          %371 = vset.pattern.permute.xlu0 0
          %372 = vperm.xlu0 %371, %v369
          %v373 = vpop.permute.xlu0 %372
          %v375 = vmul.f32 %v368, %v373
          %376 = vst [vmem:[%s299] sm:$0x3] %v375
        $region52: #{tpu_custom_call.1} parent=35 // pred_fallthru
          _
        %s377 = sand.u32 %s165, 1
        %s378 = scalar_lea.sflag [#allocation5], %s377
        %s379 = sand.u32 %s165, 1
        %s380 = smul.addr %s379, 2
        %s381 = scalar_lea.vmem [#allocation8], %s380
        // Predicated region
        $region53: #{tpu_custom_call.1} parent=35 // pred_check
          %p382 = pneg %p175
        $region54: #{tpu_custom_call.1} parent=35 // pred_check_branch
          %384 = sbr.rel (%p382) target = $region56
        $region55: #{tpu_custom_call.1} parent=35 // pred_region
          %s386 = ssub.s32 32, 32
          %387 = vsyncadd %s378, %s386
          %s388 = sadd.s32 %s29, %s28
          %s389 = smul.addr %s388, 32
          %s390 = scalar_lea.hbm %s4, %s389
          %s392 = sshll.u32 %s381, 4
          %s393 = int_to_ptr.vmem [resolvable:$true] %s392
          %395 = dma.vmem_to_hbm [thread:$0]  %s393, 32, %s390, %s378
        $region56: #{tpu_custom_call.1} parent=35 // pred_fallthru
          _
      $region36: #{tpu_custom_call.1} parent=5 // pred_fallthru
        _
      %p396 = scmp.le.s32.totalorder 2, %s17
      // Predicated region
      $region57: #{tpu_custom_call.1} parent=5 // pred_check
        %p397 = pneg %p396
      $region58: #{tpu_custom_call.1} parent=5 // pred_check_branch
        %399 = sbr.rel (%p397) target = $region60
      $region59: #{tpu_custom_call.1} parent=5 // pred_region
        %s400 = ssub.s32 %s17, 2
        // Predicated region
        $region61: #{tpu_custom_call.1} parent=59 // pred_check
          %p401 = pneg %p181
        $region62: #{tpu_custom_call.1} parent=59 // pred_check_branch
          %403 = sbr.rel (%p401) target = $region64
        $region63: #{tpu_custom_call.1} parent=59 // pred_region
          %s404 = sand.u32 %s166, 1
          %s405 = scalar_lea.sflag [#allocation5], %s404
          %s406 = sand.u32 %s166, 1
          %s407 = smul.addr %s406, 2
          %s408 = scalar_lea.vmem [#allocation8], %s407
          %409 = dma.done %s405, 32
        $region64: #{tpu_custom_call.1} parent=59 // pred_fallthru
          _
      $region60: #{tpu_custom_call.1} parent=5 // pred_fallthru
        _
    $region6: #{tpu_custom_call.1} parent=1 // loop_footer
      %s21 = sadd.s32 1, %s17
    $region7: #{tpu_custom_call.1} parent=1 // loop_footer_branch
      %16 = sbr.rel target = $region3
    $region8: #{tpu_custom_call.1} parent=1 // loop_exit
      _
    %410 = vsyncpa [#allocation4], 1
    %s411 = scalar_lea.sflag [#allocation4], 1
    %412 = vsyncpa %s411, 1
    %413 = vsyncpa [#allocation5], 1
    %s414 = scalar_lea.sflag [#allocation5], 1
    %415 = vsyncpa %s414, 1
    %416 = vsyncpa [#allocation6], 1
    %s417 = scalar_lea.sflag [#allocation6], 1
    %418 = vsyncpa %s417, 1

</llo_original>
